<compile_context>
chip_gen: v5e
topology: v5e:2x2
jax: 0.10.0
libtpu: 0.0.40
codegen_flags: <defaults>
</compile_context>

<pallas_src>
import functools
import math

import jax
import jax.numpy as jnp
from jax import lax
from jax.experimental import pallas as pl
from jax.experimental.pallas import tpu as pltpu


# --------------------------------------------------------------------------
# small helpers
# --------------------------------------------------------------------------
def _silu(x):
    return x * (1.0 / (1.0 + jnp.exp(-x)))


def _row_tile(rows, target=1024):
    """Largest row tile that is a multiple of 8 and divides `rows` (or all rows)."""
    if rows <= target:
        return rows
    for t in range(target, 0, -8):
        if t % 8 == 0 and rows % t == 0:
            return t
    return rows


def _grouped_1x1_to_dense(w_oihw, cin, cout, groups):
    """Expand a grouped 1x1 conv weight (Cout, Cin/g, 1, 1) into a dense
    (Cin, Cout) matmul matrix (zeros outside each group's block)."""
    w = w_oihw[:, :, 0, 0]                       # (Cout, Cin/g)
    cin_g = cin // groups
    cout_g = cout // groups
    i = jnp.arange(cin)[:, None]                 # (Cin, 1)
    o = jnp.arange(cout)[None, :]                # (1, Cout)
    j = i - (o // cout_g) * cin_g                # within-group input index
    valid = (j >= 0) & (j < cin_g)
    return jnp.where(valid, w[o, jnp.clip(j, 0, cin_g - 1)], 0.0)


# --------------------------------------------------------------------------
# Pallas kernel 1: pointwise (1x1) conv + folded BN bias + SiLU  (MXU matmul)
# --------------------------------------------------------------------------
def _pw_conv_silu_kernel(x_ref, w_ref, b_ref, o_ref):
    y = jnp.dot(x_ref[...], w_ref[...], preferred_element_type=jnp.float32)
    y = y + b_ref[...]
    o_ref[...] = _silu(y).astype(o_ref.dtype)


def pointwise_conv_silu(x2d, w, b):
    """silu(x2d @ w + b) via Pallas.  x2d: (R, Cin) bf16, w: (Cin, Cout) bf16,
    b: (1, Cout) f32.  Output dtype == x2d dtype."""
    R, Cin = x2d.shape
    Cout = w.shape[1]
    tm = _row_tile(R)
    grid = (R // tm,)
    return pl.pallas_call(
        _pw_conv_silu_kernel,
        out_shape=jax.ShapeDtypeStruct((R, Cout), x2d.dtype),
        grid_spec=pltpu.PrefetchScalarGridSpec(
            num_scalar_prefetch=0,
            grid=grid,
            in_specs=[
                pl.BlockSpec((tm, Cin), lambda i: (i, 0)),
                pl.BlockSpec((Cin, Cout), lambda i: (0, 0)),
                pl.BlockSpec((1, Cout), lambda i: (0, 0)),
            ],
            out_specs=pl.BlockSpec((tm, Cout), lambda i: (i, 0)),
        ),
        compiler_params=pltpu.CompilerParams(dimension_semantics=("parallel",)),
    )(x2d, w, b)


# --------------------------------------------------------------------------
# Pallas kernel 2: fused ASFF core + expand (per batch element, all in VMEM)
# --------------------------------------------------------------------------
def _asff_fused_kernel(l0h_ref, l1h_ref, l2_ref,
                       wcat_ref, wcb_ref, wl2w_ref, wl2b_ref,
                       eaw_ref, eab_ref, ebw_ref, ebb_ref,
                       o_ref, *, W, s0, s1):
    f32 = jnp.float32
    bf16 = jnp.bfloat16
    HW, C = l2_ref.shape

    def up_rows(x, s):
        """Nearest-neighbour vertical upsample: replicate each coarse image-row
        band (W rows of the flattened map) `s` times.  Only tile-aligned static
        slices + sublane concatenation (W is a multiple of 8)."""
        if s == 1:
            return x
        hc = x.shape[0] // W
        bands = [x[h0 * W:(h0 + 1) * W, :] for h0 in range(hc)]
        return jnp.concatenate(
            [bands[h0] for h0 in range(hc) for _ in range(s)], axis=0)

    l0 = up_rows(l0h_ref[...], s0)              # (HW, C) bf16
    l1 = up_rows(l1h_ref[...], s1)              # (HW, C) bf16
    l2 = l2_ref[...]                            # (HW, C) bf16

    # --- per-level 1x1 weight convs (batched as ONE block-diagonal matmul),
    #     then the weight_levels 1x1 conv on the implicit channel concat -------
    xcat = jnp.concatenate([l0, l1, l2], axis=1)                       # (HW, 3C)
    v = jnp.dot(xcat, wcat_ref[...], preferred_element_type=f32)
    v = _silu(v + wcb_ref[...])                                        # (HW, 3*cc)
    z = jnp.dot(v.astype(bf16), wl2w_ref[...], preferred_element_type=f32)
    z = _silu(z + wl2b_ref[...])                                       # (HW, 3)

    # --- softmax over the 3 level logits (VPU/EUP) ----------------------------
    z0, z1, z2 = z[:, 0:1], z[:, 1:2], z[:, 2:3]
    m = jnp.maximum(jnp.maximum(z0, z1), z2)
    e0 = jnp.exp(z0 - m)
    e1 = jnp.exp(z1 - m)
    e2 = jnp.exp(z2 - m)
    inv = 1.0 / (e0 + e1 + e2)

    # --- softmax-weighted feature fusion (f32 on VPU) --------------------------
    fused = (l0.astype(f32) * (e0 * inv)
             + l1.astype(f32) * (e1 * inv)
             + l2.astype(f32) * (e2 * inv))                            # (HW, C)
    fused_bf = fused.astype(bf16)

    # --- image-boundary masks for the expand conv's zero padding --------------
    r = lax.broadcasted_iota(jnp.int32, (HW, 1), 0)
    col = r % W
    has_up = r >= W                  # a row h-1 exists
    has_down = r < (HW - W)          # a row h+1 exists
    has_left = col > 0               # a col w-1 exists (no wrap across rows)
    has_right = col < (W - 1)        # a col w+1 exists

    # --- expand part 1: (3,1) conv + BN + SiLU ---------------------------------
    # out[h] = x[h-1]@A0 + x[h]@A1 + x[h+1]@A2.  All three taps come out of a
    # single (HW, C) @ (C, 3C) MXU matmul; the +/-1 row shifts are sublane rolls.
    cm = eaw_ref.shape[1] // 3
    a_all = jnp.dot(fused_bf, eaw_ref[...], preferred_element_type=f32)  # (HW, 3*cm)
    a0 = a_all[:, 0:cm]
    a1 = a_all[:, cm:2 * cm]
    a2 = a_all[:, 2 * cm:3 * cm]
    y = a1 + eab_ref[...]
    y = y + jnp.where(has_up, pltpu.roll(a0, W, axis=0), 0.0)          # from row h-1
    y = y + jnp.where(has_down, pltpu.roll(a2, HW - W, axis=0), 0.0)   # from row h+1
    y = _silu(y)
    y_bf = y.astype(bf16)

    # --- expand part 2: (1,3) conv + BN + SiLU ---------------------------------
    co = ebw_ref.shape[1] // 3
    b_all = jnp.dot(y_bf, ebw_ref[...], preferred_element_type=f32)     # (HW, 3*co)
    b0 = b_all[:, 0:co]
    b1 = b_all[:, co:2 * co]
    b2 = b_all[:, 2 * co:3 * co]
    out = b1 + ebb_ref[...]
    out = out + jnp.where(has_left, pltpu.roll(b0, 1, axis=0), 0.0)        # from w-1
    out = out + jnp.where(has_right, pltpu.roll(b2, HW - 1, axis=0), 0.0)  # from w+1
    o_ref[...] = _silu(out).astype(o_ref.dtype)


# --------------------------------------------------------------------------
# parameter preparation (BN folding, grouped->dense, bf16 cast for MXU)
# --------------------------------------------------------------------------
def _prep_kernel_params(P, *, eps=1e-5, mxu_dtype=jnp.bfloat16):
    def fuse(w_mat, bn):  # fold eval-mode BatchNorm; w_mat last dim == Cout
        scale = bn["gamma"] / jnp.sqrt(bn["var"] + eps)
        return w_mat * scale, (bn["beta"] - bn["mean"] * scale)[None, :]

    def pw_dense(w_oihw):  # standard 1x1: (Cout, Cin, 1, 1) -> (Cin, Cout)
        return jnp.transpose(w_oihw[:, :, 0, 0], (1, 0))

    kp = {}
    # level-0/1 grouped 1x1 compress convs (run at coarse resolution).
    # TODO(synk): the dense expansion wastes MXU MACs on zeros; a per-group VPU
    # multiply-add (cin_g taps per output channel) would avoid that.
    for name in ("c0", "c1"):
        w4 = P[name]["w"]
        groups = P[name]["groups"]
        cout, cin_g = w4.shape[0], w4.shape[1]
        dense = _grouped_1x1_to_dense(w4, cin_g * groups, cout, groups)
        w, b = fuse(dense, P[name]["bn"])
        kp[name + "_w"] = w.astype(mxu_dtype)
        kp[name + "_b"] = b

    # the three per-level "weight" 1x1 convs as one block-diagonal matmul
    ws, bs = [], []
    for name in ("w0", "w1", "w2"):
        w, b = fuse(pw_dense(P[name]["w"]), P[name]["bn"])
        ws.append(w)
        bs.append(b)
    C, cc = ws[0].shape
    wcat = jnp.zeros((3 * C, 3 * cc), jnp.float32)
    for j in range(3):
        wcat = wcat.at[j * C:(j + 1) * C, j * cc:(j + 1) * cc].set(ws[j])
    kp["wcat"] = wcat.astype(mxu_dtype)                       # (3C, 3*cc)
    kp["wcb"] = jnp.concatenate(bs, axis=1)                   # (1, 3*cc) f32

    w, b = fuse(pw_dense(P["wl"]["w"]), P["wl"]["bn"])
    kp["wl2w"] = w.astype(mxu_dtype)                          # (3*cc, 3)
    kp["wl2b"] = b                                            # (1, 3)

    # expand (3,1) conv: taps concatenated along the output (lane) dim
    eaw = jnp.transpose(P["ea"]["w"][:, :, :, 0], (2, 1, 0))  # (3, Cin, Cout)
    w3, b = fuse(eaw, P["ea"]["bn"])
    kp["eaw"] = jnp.concatenate([w3[0], w3[1], w3[2]], axis=1).astype(mxu_dtype)
    kp["eab"] = b
    # expand (1,3) conv
    ebw = jnp.transpose(P["eb"]["w"][:, :, 0, :], (2, 1, 0))  # (3, Cin, Cout)
    w3, b = fuse(ebw, P["eb"]["bn"])
    kp["ebw"] = jnp.concatenate([w3[0], w3[1], w3[2]], axis=1).astype(mxu_dtype)
    kp["ebb"] = b
    return kp


def make_params(key, *, c_big, c_small, compress_c=16):
    """Random Conv/BN parameters for the level==2 ASFFV5 blocks."""
    keys = iter(jax.random.split(key, 64))

    def conv_w(shape):
        fan_in = shape[1] * shape[2] * shape[3]
        return jax.random.normal(next(keys), shape, jnp.float32) / jnp.sqrt(fan_in)

    def bn(c):
        return dict(
            gamma=jax.random.uniform(next(keys), (c,), jnp.float32, 0.5, 1.5),
            beta=0.1 * jax.random.normal(next(keys), (c,), jnp.float32),
            mean=0.1 * jax.random.normal(next(keys), (c,), jnp.float32),
            var=jax.random.uniform(next(keys), (c,), jnp.float32, 0.5, 1.5),
        )

    g = math.gcd(c_big, c_small)  # DWConv grouping
    return {
        "c0": dict(w=conv_w((c_small, c_big // g, 1, 1)), bn=bn(c_small), groups=g),
        "c1": dict(w=conv_w((c_small, c_big // g, 1, 1)), bn=bn(c_small), groups=g),
        "w0": dict(w=conv_w((compress_c, c_small, 1, 1)), bn=bn(compress_c), groups=1),
        "w1": dict(w=conv_w((compress_c, c_small, 1, 1)), bn=bn(compress_c), groups=1),
        "w2": dict(w=conv_w((compress_c, c_small, 1, 1)), bn=bn(compress_c), groups=1),
        "wl": dict(w=conv_w((3, compress_c * 3, 1, 1)), bn=bn(3), groups=1),
        "ea": dict(w=conv_w((c_small, c_small, 3, 1)), bn=bn(c_small), groups=1),
        "eb": dict(w=conv_w((c_small, c_small, 1, 3)), bn=bn(c_small), groups=1),
    }


# --------------------------------------------------------------------------
# ASFFV5 forward (level == 2), Pallas path
# --------------------------------------------------------------------------
def asff_v5_forward(inputs, P, *, level=2):
    """inputs = (x[0], x[1], x[2]) in NCHW, exactly like ASFFV5.forward."""
    if level != 2:
        # TODO(synk): levels 0/1 additionally need stride-2 DWConv / max_pool2d
        # resize paths; only the level==2 (1x1 compress + nearest upsample) path
        # is implemented with Pallas kernels here.
        raise NotImplementedError("only level == 2 is implemented")

    x_level_0 = inputs[2]   # smallest spatial, 512*m channels
    x_level_1 = inputs[1]
    x_level_2 = inputs[0]   # largest spatial, 256*m channels (= inter_dim)
    N, inter_dim, H, W = x_level_2.shape
    HW = H * W
    s0 = H // x_level_0.shape[2]
    s1 = H // x_level_1.shape[2]

    kp = _prep_kernel_params(P)

    def compress_hrep(x_nchw, w, b, s):
        n, cin, h, wd = x_nchw.shape
        x2 = jnp.transpose(x_nchw, (0, 2, 3, 1)).reshape(n * h * wd, cin)
        y2 = pointwise_conv_silu(x2.astype(jnp.bfloat16), w, b)   # coarse-res matmul
        y = y2.reshape(n, h, wd, -1)
        # horizontal nearest-neighbour replication at *coarse* height (cheap,
        # plain XLA); vertical replication happens inside the fused kernel so
        # full-resolution level maps never round-trip HBM.
        y = jnp.repeat(y, s, axis=2)                               # (n, h, W, C)
        return y.reshape(n, h * wd * s, -1)

    l0h = compress_hrep(x_level_0, kp["c0_w"], kp["c0_b"], s0)     # (N, H0*W, C)
    l1h = compress_hrep(x_level_1, kp["c1_w"], kp["c1_b"], s1)     # (N, H1*W, C)
    l2 = jnp.transpose(x_level_2, (0, 2, 3, 1)).reshape(N, HW, inter_dim)
    l2 = l2.astype(jnp.bfloat16)

    rows0 = l0h.shape[1]
    rows1 = l1h.shape[1]
    c_out = kp["ebb"].shape[1]
    kernel = functools.partial(_asff_fused_kernel, W=W, s0=s0, s1=s1)

    out_flat = pl.pallas_call(
        kernel,
        out_shape=jax.ShapeDtypeStruct((N, HW, c_out), jnp.float32),
        grid_spec=pltpu.PrefetchScalarGridSpec(
            num_scalar_prefetch=0,
            grid=(N,),
            in_specs=[
                pl.BlockSpec((None, rows0, inter_dim), lambda n: (n, 0, 0)),
                pl.BlockSpec((None, rows1, inter_dim), lambda n: (n, 0, 0)),
                pl.BlockSpec((None, HW, inter_dim), lambda n: (n, 0, 0)),
                pl.BlockSpec(kp["wcat"].shape, lambda n: (0, 0)),
                pl.BlockSpec(kp["wcb"].shape, lambda n: (0, 0)),
                pl.BlockSpec(kp["wl2w"].shape, lambda n: (0, 0)),
                pl.BlockSpec(kp["wl2b"].shape, lambda n: (0, 0)),
                pl.BlockSpec(kp["eaw"].shape, lambda n: (0, 0)),
                pl.BlockSpec(kp["eab"].shape, lambda n: (0, 0)),
                pl.BlockSpec(kp["ebw"].shape, lambda n: (0, 0)),
                pl.BlockSpec(kp["ebb"].shape, lambda n: (0, 0)),
            ],
            out_specs=pl.BlockSpec((None, HW, c_out), lambda n: (n, 0, 0)),
        ),
        compiler_params=pltpu.CompilerParams(
            dimension_semantics=("parallel",),
            vmem_limit_bytes=64 * 1024 * 1024),
    )(l0h, l1h, l2, kp["wcat"], kp["wcb"], kp["wl2w"], kp["wl2b"],
      kp["eaw"], kp["eab"], kp["ebw"], kp["ebb"])

    return jnp.transpose(out_flat.reshape(N, H, W, c_out), (0, 3, 1, 2))


# --------------------------------------------------------------------------
# pure-JAX (XLA) reference, mirroring the PyTorch module op-by-op (all f32)
# --------------------------------------------------------------------------
def _conv_bn_silu_nchw(x, w, bn, *, padding, groups=1, eps=1e-5):
    y = lax.conv_general_dilated(
        x, w, window_strides=(1, 1), padding=padding,
        dimension_numbers=("NCHW", "OIHW", "NCHW"), feature_group_count=groups)
    scale = bn["gamma"] / jnp.sqrt(bn["var"] + eps)
    shift = bn["beta"] - bn["mean"] * scale
    y = y * scale[None, :, None, None] + shift[None, :, None, None]
    return y * jax.nn.sigmoid(y)


def asff_ref(inputs, P):
    x_level_0, x_level_1, x_level_2 = inputs[2], inputs[1], inputs[0]
    H = x_level_2.shape[2]
    s0 = H // x_level_0.shape[2]
    s1 = H // x_level_1.shape[2]
    zero = ((0, 0), (0, 0))

    l0c = _conv_bn_silu_nchw(x_level_0, P["c0"]["w"], P["c0"]["bn"],
                             padding=zero, groups=P["c0"]["groups"])
    level_0_resized = jnp.repeat(jnp.repeat(l0c, s0, axis=2), s0, axis=3)
    l1c = _conv_bn_silu_nchw(x_level_1, P["c1"]["w"], P["c1"]["bn"],
                             padding=zero, groups=P["c1"]["groups"])
    level_1_resized = jnp.repeat(jnp.repeat(l1c, s1, axis=2), s1, axis=3)
    level_2_resized = x_level_2

    w0 = _conv_bn_silu_nchw(level_0_resized, P["w0"]["w"], P["w0"]["bn"], padding=zero)
    w1 = _conv_bn_silu_nchw(level_1_resized, P["w1"]["w"], P["w1"]["bn"], padding=zero)
    w2 = _conv_bn_silu_nchw(level_2_resized, P["w2"]["w"], P["w2"]["bn"], padding=zero)
    cat = jnp.concatenate([w0, w1, w2], axis=1)
    lw = _conv_bn_silu_nchw(cat, P["wl"]["w"], P["wl"]["bn"], padding=zero)
    lw = jax.nn.softmax(lw, axis=1)
    fused = (level_0_resized * lw[:, 0:1] + level_1_resized * lw[:, 1:2]
             + level_2_resized * lw[:, 2:3])
    y = _conv_bn_silu_nchw(fused, P["ea"]["w"], P["ea"]["bn"], padding=((1, 1), (0, 0)))
    return _conv_bn_silu_nchw(y, P["eb"]["w"], P["eb"]["bn"], padding=((0, 0), (1, 1)))


# --------------------------------------------------------------------------
if __name__ == "__main__":
    key = jax.random.PRNGKey(0)
    k_in, k_par = jax.random.split(key)

    multiplier = 0.5
    c_big, c_small = int(512 * multiplier), int(256 * multiplier)   # 256, 128
    N, H, W = 2, 16, 16

    k0, k1, k2 = jax.random.split(k_in, 3)
    x_large = jax.random.normal(k0, (N, c_small, H, W), jnp.float32)          # x[0]
    x_mid = jax.random.normal(k1, (N, c_big, H // 2, W // 2), jnp.float32)    # x[1]
    x_small = jax.random.normal(k2, (N, c_big, H // 4, W // 4), jnp.float32)  # x[2]
    inputs = (x_large, x_mid, x_small)

    P = make_params(k_par, c_big=c_big, c_small=c_small, compress_c=16)

    out = jax.block_until_ready(asff_v5_forward(inputs, P, level=2))
    ref = jax.block_until_ready(asff_ref(inputs, P))

    assert out.shape == ref.shape, (out.shape, ref.shape)
    rel_err = float(jnp.linalg.norm(out - ref) / (jnp.linalg.norm(ref) + 1e-12))
    # Tolerance sized for the bf16-MXU path (f32 accumulation); the reference is
    # computed entirely in f32.
    assert rel_err < 4e-2, f"Pallas ASFFV5 mismatch vs JAX reference: rel_l2={rel_err}"
    print("KERNEL_OK")
</pallas_src>

<mosaic_0001>
module attributes {stable_mosaic.version = 11 : i64} {
  func.func @_pw_conv_silu_kernel(%arg0: i32, %arg1: memref<32x256xbf16, #tpu.memory_space<vmem>>, %arg2: memref<256x128xbf16, #tpu.memory_space<vmem>>, %arg3: memref<1x128xf32, #tpu.memory_space<vmem>>, %arg4: memref<32x128xbf16, #tpu.memory_space<vmem>>) attributes {dimension_semantics = [#tpu.dimension_semantics<parallel>], iteration_bounds = array<i64: 1>, scalar_prefetch = 0 : i64, scratch_operands = 0 : i64, tpu.core_type = #tpu.core_type<tc>, window_params = [{transform_indices = @transform_0, window_bounds = array<i64: 32, 256>}, {pipeline_mode = #tpu.pipeline_mode<synchronous>, transform_indices = @transform_1, window_bounds = array<i64: 256, 128>}, {pipeline_mode = #tpu.pipeline_mode<synchronous>, transform_indices = @transform_2, window_bounds = array<i64: 1, 128>}, {transform_indices = @transform_3, window_bounds = array<i64: 32, 128>}]} {
    %c0 = arith.constant 0 : index
    %c0_0 = arith.constant 0 : index
    %0 = vector.load %arg1[%c0, %c0_0] : memref<32x256xbf16, #tpu.memory_space<vmem>>, vector<32x256xbf16>
    %c0_1 = arith.constant 0 : index
    %c0_2 = arith.constant 0 : index
    %1 = vector.load %arg2[%c0_1, %c0_2] : memref<256x128xbf16, #tpu.memory_space<vmem>>, vector<256x128xbf16>
    %cst = arith.constant dense<0.000000e+00> : vector<32x128xf32>
    %2 = tpu.matmul %0, %1, %cst {dimension_numbers = #tpu.dot_dimension_numbers<[1], [0], [0], [1], [0, 0, 1, 1], [], []>} : vector<32x256xbf16>, vector<256x128xbf16>, vector<32x128xf32> -> vector<32x128xf32>
    %c0_3 = arith.constant 0 : index
    %c0_4 = arith.constant 0 : index
    %3 = vector.load %arg3[%c0_3, %c0_4] : memref<1x128xf32, #tpu.memory_space<vmem>>, vector<1x128xf32>
    %4 = vector.broadcast %3 : vector<1x128xf32> to vector<32x128xf32>
    %5 = arith.addf %2, %4 : vector<32x128xf32>
    %cst_5 = arith.constant 0.000000e+00 : f32
    %6 = vector.broadcast %cst_5 : f32 to vector<32x128xf32>
    %7 = arith.subf %6, %5 : vector<32x128xf32>
    %8 = math.exp %7 : vector<32x128xf32>
    %cst_6 = arith.constant 1.000000e+00 : f32
    %9 = vector.broadcast %cst_6 : f32 to vector<32x128xf32>
    %10 = arith.addf %9, %8 : vector<32x128xf32>
    %cst_7 = arith.constant 1.000000e+00 : f32
    %11 = vector.broadcast %cst_7 : f32 to vector<32x128xf32>
    %12 = arith.divf %11, %10 : vector<32x128xf32>
    %13 = arith.mulf %5, %12 : vector<32x128xf32>
    %14 = arith.truncf %13 : vector<32x128xf32> to vector<32x128xbf16>
    %c0_8 = arith.constant 0 : index
    %c0_9 = arith.constant 0 : index
    %15 = vector.load %arg4[%c0_8, %c0_9] : memref<32x128xbf16, #tpu.memory_space<vmem>>, vector<32x128xbf16>
    tpu.vector_store %arg4[%c0_8, %c0_9], %14 {strides = array<i32>} : memref<32x128xbf16, #tpu.memory_space<vmem>>, vector<32x128xbf16>,
    return
  }
  func.func @transform_0(%arg0: i32) -> (i32, i32) {
    %c0_i32 = arith.constant 0 : i32
    %c0_i32_0 = arith.constant 0 : i32
    return %arg0, %c0_i32 : i32, i32
  }
  func.func @transform_1(%arg0: i32) -> (i32, i32) {
    %c0_i32 = arith.constant 0 : i32
    %c0_i32_0 = arith.constant 0 : i32
    %c0_i32_1 = arith.constant 0 : i32
    return %c0_i32, %c0_i32_0 : i32, i32
  }
  func.func @transform_2(%arg0: i32) -> (i32, i32) {
    %c0_i32 = arith.constant 0 : i32
    %c0_i32_0 = arith.constant 0 : i32
    %c0_i32_1 = arith.constant 0 : i32
    return %c0_i32, %c0_i32_0 : i32, i32
  }
  func.func @transform_3(%arg0: i32) -> (i32, i32) {
    %c0_i32 = arith.constant 0 : i32
    %c0_i32_0 = arith.constant 0 : i32
    return %arg0, %c0_i32 : i32, i32
  }
}

</mosaic_0001>

<llo_original>
// kernel: tpu_custom_call.1
$region0: #{tpu_custom_call.1}
  #allocation0 [shape = 'u32[]', space=smem, size = 0x4, offset = 0x4, fixed_abs, tag = 'smem constant byte address 0x4 - core index']
  #allocation1 [shape = 'u32[72,128]{1,0:T(1,128)}', space=vmem, size = 0x9000, scoped, tag = 'internal scratch']
  %s0 = inlined_call_operand.hbm [shape: bf16[32,256], index: 0, kind: input, shape index: {}]
  %s1 = inlined_call_operand.hbm [shape: bf16[256,128], index: 1, kind: input, shape index: {}]
  %s2 = inlined_call_operand.vmem [shape: f32[1,128], index: 2, kind: input, shape index: {}]
  %s3 = inlined_call_operand.hbm [shape: bf16[32,128], index: 3, kind: output, shape index: {}]
  %s4 = sld [smem:[#allocation0]]
  $region30: #{tpu_custom_call.1} parent=0
    _
  %s6 = ssub.s32 1, %s4
  %s7 = scalar_select 0, %s6, %s4
  $region1: #{tpu_custom_call.1} parent=0
    #allocation2 [shape = 'u8[16384]{0}', space=vmem, size = 0x4000, scoped, tag = 'input window, operand 0, single buffered']
    #allocation3 [shape = 's32[1]{0}', space=sflag, size = 0x4, scoped, tag = 'scoped memory for tpu_custom_call.1']
    #allocation4 [shape = 's32[1]{0}', space=sflag, size = 0x4, scoped, tag = 'scoped memory for tpu_custom_call.1']
    #allocation5 [shape = 'u8[65536]{0}', space=vmem, size = 0x10000, scoped, tag = 'input window, operand 1, single buffered']
    #allocation6 [shape = 's32[1]{0}', space=sflag, size = 0x4, scoped, tag = 'scoped memory for tpu_custom_call.1']
    #allocation7 [shape = 'u8[8192]{0}', space=vmem, size = 0x2000, scoped, tag = 'output window, operand 0, single buffered']
    %8 = vsyncpa [#allocation3], 0
    %9 = vsyncpa [#allocation6], 0
    %10 = vsyncpa [#allocation4], 0
    // Predicated region
    $region2: #{tpu_custom_call.1} parent=1 // pred_check
      _
    $region3: #{tpu_custom_call.1} parent=1 // pred_check_branch
      %12 = sbr.rel (0) target = $region5
    $region4: #{tpu_custom_call.1} parent=1 // pred_region
      %14 = vsyncadd [#allocation3], 0
      %s15 = sshll.u32 %s0, 4
      %s16 = int_to_ptr.hbm [resolvable:$true] %s15
      %s17 = sshll.u32 [#allocation2], 4
      %s18 = int_to_ptr.vmem [resolvable:$true] %s17
      %23 = dma.hbm_to_vmem [thread:$0]  %s16, 512, %s18, [#allocation3], 128, 128, 8
    $region5: #{tpu_custom_call.1} parent=1 // pred_fallthru
      _
    // Predicated region
    $region6: #{tpu_custom_call.1} parent=1 // pred_check
      _
    $region7: #{tpu_custom_call.1} parent=1 // pred_check_branch
      %25 = sbr.rel (0) target = $region9
    $region8: #{tpu_custom_call.1} parent=1 // pred_region
      %27 = vsyncadd [#allocation6], 0
      %s28 = sshll.u32 %s1, 4
      %s29 = int_to_ptr.hbm [resolvable:$true] %s28
      %s30 = sshll.u32 [#allocation5], 4
      %s31 = int_to_ptr.vmem [resolvable:$true] %s30
      %36 = dma.hbm_to_vmem [thread:$0]  %s29, 2048, %s31, [#allocation6], 64, 64, 4
    $region9: #{tpu_custom_call.1} parent=1 // pred_fallthru
      _
    // Predicated region
    $region10: #{tpu_custom_call.1} parent=1 // pred_check
      _
    $region11: #{tpu_custom_call.1} parent=1 // pred_check_branch
      %38 = sbr.rel (0) target = $region13
    $region12: #{tpu_custom_call.1} parent=1 // pred_region
      _
    $region13: #{tpu_custom_call.1} parent=1 // pred_fallthru
      _
    // Predicated region
    $region14: #{tpu_custom_call.1} parent=1 // pred_check
      _
    $region15: #{tpu_custom_call.1} parent=1 // pred_check_branch
      %40 = sbr.rel (0) target = $region17
    $region16: #{tpu_custom_call.1} parent=1 // pred_region
      %42 = dma.done [#allocation3], 512
    $region17: #{tpu_custom_call.1} parent=1 // pred_fallthru
      _
    // Predicated region
    $region18: #{tpu_custom_call.1} parent=1 // pred_check
      _
    $region19: #{tpu_custom_call.1} parent=1 // pred_check_branch
      %44 = sbr.rel (0) target = $region21
    $region20: #{tpu_custom_call.1} parent=1 // pred_region
      %46 = dma.done [#allocation6], 2048
    $region21: #{tpu_custom_call.1} parent=1 // pred_fallthru
      _
    %v47 = vld [vmem:[#allocation2] sm:$0xff]
    %v48 = vld [vmem:[#allocation2 + $0x8] sm:$0xff]
    %v49 = vld [vmem:[#allocation2 + $0x10] sm:$0xff]
    %v50 = vld [vmem:[#allocation2 + $0x18] sm:$0xff]
    %v51 = vld [vmem:[#allocation5] sm:$0xf]
    %v52 = vld [vmem:[#allocation5 + $0x4] sm:$0xf]
    %v53 = vld [vmem:[#allocation5 + $0x8] sm:$0xf]
    %v54 = vld [vmem:[#allocation5 + $0xc] sm:$0xf]
    %v55 = vld [vmem:[#allocation5 + $0x10] sm:$0xf]
    %v56 = vld [vmem:[#allocation5 + $0x14] sm:$0xf]
    %v57 = vld [vmem:[#allocation5 + $0x18] sm:$0xf]
    %v58 = vld [vmem:[#allocation5 + $0x1c] sm:$0xf]
    %v59 = vld [vmem:[#allocation5 + $0x20] sm:$0xf]
    %v60 = vld [vmem:[#allocation5 + $0x24] sm:$0xf]
    %v61 = vld [vmem:[#allocation5 + $0x28] sm:$0xf]
    %v62 = vld [vmem:[#allocation5 + $0x2c] sm:$0xf]
    %v63 = vld [vmem:[#allocation5 + $0x30] sm:$0xf]
    %v64 = vld [vmem:[#allocation5 + $0x34] sm:$0xf]
    %v65 = vld [vmem:[#allocation5 + $0x38] sm:$0xf]
    %v66 = vld [vmem:[#allocation5 + $0x3c] sm:$0xf]
    %v67 = vld [vmem:[#allocation5 + $0x40] sm:$0xf]
    %v68 = vld [vmem:[#allocation5 + $0x44] sm:$0xf]
    %v69 = vld [vmem:[#allocation5 + $0x48] sm:$0xf]
    %v70 = vld [vmem:[#allocation5 + $0x4c] sm:$0xf]
    %v71 = vld [vmem:[#allocation5 + $0x50] sm:$0xf]
    %v72 = vld [vmem:[#allocation5 + $0x54] sm:$0xf]
    %v73 = vld [vmem:[#allocation5 + $0x58] sm:$0xf]
    %v74 = vld [vmem:[#allocation5 + $0x5c] sm:$0xf]
    %v75 = vld [vmem:[#allocation5 + $0x60] sm:$0xf]
    %v76 = vld [vmem:[#allocation5 + $0x64] sm:$0xf]
    %v77 = vld [vmem:[#allocation5 + $0x68] sm:$0xf]
    %v78 = vld [vmem:[#allocation5 + $0x6c] sm:$0xf]
    %v79 = vld [vmem:[#allocation5 + $0x70] sm:$0xf]
    %v80 = vld [vmem:[#allocation5 + $0x74] sm:$0xf]
    %v81 = vld [vmem:[#allocation5 + $0x78] sm:$0xf]
    %v82 = vld [vmem:[#allocation5 + $0x7c] sm:$0xf]
    %v83 = vld [vmem:[%s2] sm:$0x1]
    %v85 = vperm.slane %v83, 0
    %v91 = vunpack.c.l.b16 %v47
    %v92 = vunpack.c.h.b16 %v47
    %v93 = vunpack.c.l.b16 %v48
    %v94 = vunpack.c.h.b16 %v48
    %v95 = vunpack.c.l.b16 %v49
    %v96 = vunpack.c.h.b16 %v49
    %v97 = vunpack.c.l.b16 %v50
    %v98 = vunpack.c.h.b16 %v50
    %v99 = vpack.c.b16 %v93, %v91
    %v100 = vpack.c.b16 %v94, %v92
    %v101 = vpack.c.b16 %v97, %v95
    %v102 = vpack.c.b16 %v98, %v96
    %v139 = vunpack.c.l.b16 %v51
    %v140 = vunpack.c.l.b16 %v52
    %v141 = vunpack.c.l.b16 %v53
    %v142 = vunpack.c.l.b16 %v54
    %v143 = vunpack.c.l.b16 %v55
    %v144 = vunpack.c.l.b16 %v56
    %v145 = vunpack.c.l.b16 %v57
    %v146 = vunpack.c.l.b16 %v58
    %v147 = vunpack.c.l.b16 %v59
    %v148 = vunpack.c.l.b16 %v60
    %v149 = vunpack.c.l.b16 %v61
    %v150 = vunpack.c.l.b16 %v62
    %v151 = vunpack.c.l.b16 %v63
    %v152 = vunpack.c.l.b16 %v64
    %v153 = vunpack.c.l.b16 %v65
    %v154 = vunpack.c.l.b16 %v66
    %v155 = vunpack.c.l.b16 %v67
    %v156 = vunpack.c.l.b16 %v68
    %v157 = vunpack.c.l.b16 %v69
    %v158 = vunpack.c.l.b16 %v70
    %v159 = vunpack.c.l.b16 %v71
    %v160 = vunpack.c.l.b16 %v72
    %v161 = vunpack.c.l.b16 %v73
    %v162 = vunpack.c.l.b16 %v74
    %v163 = vunpack.c.l.b16 %v75
    %v164 = vunpack.c.l.b16 %v76
    %v165 = vunpack.c.l.b16 %v77
    %v166 = vunpack.c.l.b16 %v78
    %v167 = vunpack.c.l.b16 %v79
    %v168 = vunpack.c.l.b16 %v80
    %v169 = vunpack.c.l.b16 %v81
    %v170 = vunpack.c.l.b16 %v82
    %v171 = vpack.c.b16 %v140, %v139
    %v172 = vpack.c.b16 %v142, %v141
    %v173 = vpack.c.b16 %v144, %v143
    %v174 = vpack.c.b16 %v146, %v145
    %v175 = vpack.c.b16 %v148, %v147
    %v176 = vpack.c.b16 %v150, %v149
    %v177 = vpack.c.b16 %v152, %v151
    %v178 = vpack.c.b16 %v154, %v153
    %v179 = vpack.c.b16 %v156, %v155
    %v180 = vpack.c.b16 %v158, %v157
    %v181 = vpack.c.b16 %v160, %v159
    %v182 = vpack.c.b16 %v162, %v161
    %v183 = vpack.c.b16 %v164, %v163
    %v184 = vpack.c.b16 %v166, %v165
    %v185 = vpack.c.b16 %v168, %v167
    %v186 = vpack.c.b16 %v170, %v169
    %203 = vmatpush.bf16.msra.mxu0 %v178
    %204 = vmatpush.bf16.msra.mxu0 %v177
    %205 = vmatpush.bf16.msra.mxu0 %v176
    %206 = vmatpush.bf16.msra.mxu0 %v175
    %207 = vmatpush.bf16.msra.mxu0 %v174
    %208 = vmatpush.bf16.msra.mxu0 %v173
    %209 = vmatpush.bf16.msra.mxu0 %v172
    %210 = vmatpush.bf16.msra.mxu0 %v171
    %211 = vmatmul.bf16.gmra.mxu0 %v99
    %v212 = vpop.f32.mrf.mxu0
    %v213 = vadd.f32 %v85, %v212
    %v214 = vpop.f32.mrf.mxu0
    %v215 = vadd.f32 %v85, %v214
    %216 = vmatmul.bf16.gmra.mxu0 %v101
    %v217 = vpop.f32.mrf.mxu0
    %v218 = vadd.f32 %v85, %v217
    %v219 = vpop.f32.mrf.mxu0
    %v220 = vadd.f32 %v85, %v219
    %221 = vdwg.mxu0
    %222 = vmatpush.bf16.msra.mxu0 %v186
    %223 = vmatpush.bf16.msra.mxu0 %v185
    %224 = vmatpush.bf16.msra.mxu0 %v184
    %225 = vmatpush.bf16.msra.mxu0 %v183
    %226 = vmatpush.bf16.msra.mxu0 %v182
    %227 = vmatpush.bf16.msra.mxu0 %v181
    %228 = vmatpush.bf16.msra.mxu0 %v180
    %229 = vmatpush.bf16.msra.mxu0 %v179
    %230 = vmatmul.bf16.gmra.mxu0 %v100
    %v231 = vpop.f32.mrf.mxu0
    %v232 = vadd.f32 %v213, %v231
    %v233 = vpop.f32.mrf.mxu0
    %v234 = vadd.f32 %v215, %v233
    %235 = vmatmul.bf16.gmra.mxu0 %v102
    %v236 = vpop.f32.mrf.mxu0
    %v237 = vadd.f32 %v218, %v236
    %v238 = vpop.f32.mrf.mxu0
    %v239 = vadd.f32 %v220, %v238
    %240 = vdwg.mxu0
    %v241 = vsub.f32 0.0, %v232
    %v242 = vsub.f32 0.0, %v234
    %v243 = vsub.f32 0.0, %v237
    %v244 = vsub.f32 0.0, %v239
    %v245 = vmul.f32 %v241, 1.442695
    %v246 = vpow.pop %v245
    %v247 = vmul.f32 %v242, 1.442695
    %v248 = vpow.pop %v247
    %v249 = vmul.f32 %v243, 1.442695
    %v250 = vpow.pop %v249
    %v251 = vmul.f32 %v244, 1.442695
    %v252 = vpow.pop %v251
    %v253 = vadd.f32 %v246, 1.0
    %v254 = vadd.f32 %v248, 1.0
    %v255 = vadd.f32 %v250, 1.0
    %v256 = vadd.f32 %v252, 1.0
    %v257 = vrcp.pop %v253
    %v258 = vmul.f32 %v253, %v257
    %v259 = vsub.f32 1.0, %v258
    %v260 = vmul.f32 %v257, %v259
    %v261 = vadd.f32 %v257, %v260
    %vm262 = vweird.f32 %v253
    %vm263 = vweird.f32 %v257
    %vm264 = vmor %vm262, %vm263
    %v265 = vsel %vm264, %v257, %v261
    %v266 = vand.u32 2147483647, %v253
    %vm267 = vcmp.eq.f32.partialorder %v266, 8.507059e+37
    %v268 = vand.u32 %v253, 2147483648
    %v269 = vor.u32 1.1754944e-38, %v268
    %v270 = vsel %vm267, %v269, %v265
    %v271 = vmul.f32 1.0, %v270
    %v272 = vrcp.pop %v254
    %v273 = vmul.f32 %v254, %v272
    %v274 = vsub.f32 1.0, %v273
    %v275 = vmul.f32 %v272, %v274
    %v276 = vadd.f32 %v272, %v275
    %vm277 = vweird.f32 %v254
    %vm278 = vweird.f32 %v272
    %vm279 = vmor %vm277, %vm278
    %v280 = vsel %vm279, %v272, %v276
    %v281 = vand.u32 2147483647, %v254
    %vm282 = vcmp.eq.f32.partialorder %v281, 8.507059e+37
    %v283 = vand.u32 %v254, 2147483648
    %v284 = vor.u32 1.1754944e-38, %v283
    %v285 = vsel %vm282, %v284, %v280
    %v286 = vmul.f32 1.0, %v285
    %v287 = vrcp.pop %v255
    %v288 = vmul.f32 %v255, %v287
    %v289 = vsub.f32 1.0, %v288
    %v290 = vmul.f32 %v287, %v289
    %v291 = vadd.f32 %v287, %v290
    %vm292 = vweird.f32 %v255
    %vm293 = vweird.f32 %v287
    %vm294 = vmor %vm292, %vm293
    %v295 = vsel %vm294, %v287, %v291
    %v296 = vand.u32 2147483647, %v255
    %vm297 = vcmp.eq.f32.partialorder %v296, 8.507059e+37
    %v298 = vand.u32 %v255, 2147483648
    %v299 = vor.u32 1.1754944e-38, %v298
    %v300 = vsel %vm297, %v299, %v295
    %v301 = vmul.f32 1.0, %v300
    %v302 = vrcp.pop %v256
    %v303 = vmul.f32 %v256, %v302
    %v304 = vsub.f32 1.0, %v303
    %v305 = vmul.f32 %v302, %v304
    %v306 = vadd.f32 %v302, %v305
    %vm307 = vweird.f32 %v256
    %vm308 = vweird.f32 %v302
    %vm309 = vmor %vm307, %vm308
    %v310 = vsel %vm309, %v302, %v306
    %v311 = vand.u32 2147483647, %v256
    %vm312 = vcmp.eq.f32.partialorder %v311, 8.507059e+37
    %v313 = vand.u32 %v256, 2147483648
    %v314 = vor.u32 1.1754944e-38, %v313
    %v315 = vsel %vm312, %v314, %v310
    %v316 = vmul.f32 1.0, %v315
    %v317 = vmul.f32 %v232, %v271
    %v318 = vmul.f32 %v234, %v286
    %v319 = vmul.f32 %v237, %v301
    %v320 = vmul.f32 %v239, %v316
    %v321 = vpack.c.bf16 %v317, %v317
    %v322 = vpack.c.bf16 %v318, %v318
    %v323 = vpack.c.bf16 %v319, %v319
    %v324 = vpack.c.bf16 %v320, %v320
    %325 = vst [vmem:[#allocation7] sm:$0xf] %v321
    %326 = vst [vmem:[#allocation7 + $0x4] sm:$0xf] %v322
    %327 = vst [vmem:[#allocation7 + $0x8] sm:$0xf] %v323
    %328 = vst [vmem:[#allocation7 + $0xc] sm:$0xf] %v324
    // Predicated region
    $region22: #{tpu_custom_call.1} parent=1 // pred_check
      _
    $region23: #{tpu_custom_call.1} parent=1 // pred_check_branch
      %330 = sbr.rel (0) target = $region25
    $region24: #{tpu_custom_call.1} parent=1 // pred_region
      %332 = vsyncadd [#allocation4], 0
      %s333 = sshll.u32 [#allocation7], 4
      %s334 = int_to_ptr.vmem [resolvable:$true] %s333
      %s335 = sshll.u32 %s3, 4
      %s336 = int_to_ptr.hbm [resolvable:$true] %s335
      %341 = dma.vmem_to_hbm [thread:$0]  %s334, 256, %s336, [#allocation4], 64, 64, 4
    $region25: #{tpu_custom_call.1} parent=1 // pred_fallthru
      _
    // Predicated region
    $region26: #{tpu_custom_call.1} parent=1 // pred_check
      _
    $region27: #{tpu_custom_call.1} parent=1 // pred_check_branch
      %343 = sbr.rel (0) target = $region29
    $region28: #{tpu_custom_call.1} parent=1 // pred_region
      %345 = dma.done [#allocation4], 256
    $region29: #{tpu_custom_call.1} parent=1 // pred_fallthru
      _
    %346 = vsyncpa [#allocation3], 1
    %347 = vsyncpa [#allocation6], 1
    %348 = vsyncpa [#allocation4], 1

</llo_original>
